<compile_context>
chip_gen: v5e
topology: v5e:2x2
jax: 0.10.0
libtpu: 0.0.40
codegen_flags: <defaults>
</compile_context>

<pallas_src>
import functools

import jax
import jax.numpy as jnp
from jax.experimental import pallas as pl
from jax.experimental.pallas import tpu as pltpu


def _basic_conv_kernel(x_ref, w_ref, agg_ref, g_ref, b_ref, o_ref,
                       xf_ref, patch_ref, *,
                       H, W, KH, KW, Cin, Cout, pad, cpg, front, L, BT, gn_eps):
    """Fused weight-standardized KxK 'same' conv (stride 1) + GroupNorm + ReLU.

    x_ref     : (BT, Cin, H*W)      BT samples, channels-major, flat spatial
    w_ref     : (Cout, KH*KW*Cin)   pre-standardized conv weight
    agg_ref   : (Cout, Cout)        0/1 group-membership matrix for GroupNorm
    g_ref     : (Cout, 1)           GroupNorm gamma
    b_ref     : (Cout, 1)           GroupNorm beta
    o_ref     : (BT, Cout, H*W)     output (lane-dense)
    xf_ref    : (BT, Cin, L)        VMEM scratch: row-padded flat inputs
    patch_ref : (KH*KW*Cin, BT*H*W) VMEM scratch: im2col patch for all BT samples
    """
    HW = H * W

    # ---- W-boundary masks for horizontal taps, hoisted out of the tap loop ----
    # (only KW-1 distinct shifts; rebuilt once per grid step, reused BT*KH times)
    masks = {}
    if pad > 0:
        w_lane = jax.lax.broadcasted_iota(jnp.int32, (Cin, HW), 1) % W
        for kw in range(KW):
            shift = kw - pad
            if shift != 0 and shift not in masks:
                masks[shift] = (w_lane + shift >= 0) & (w_lane + shift < W)

    # ---- stage inputs + build the (K, BT*HW) im2col patch ----
    for b in range(BT):
        # Zero only the halo strips; the interior [front, front+HW) is fully
        # overwritten below.  Per-step halo zeroing is megacore-safe (each
        # TensorCore has its own scratch) and costs only a few vregs.
        if front > 0:
            xf_ref[b, :, 0:front] = jnp.zeros((Cin, front), xf_ref.dtype)
        if L > front + HW:
            xf_ref[b, :, front + HW:L] = jnp.zeros((Cin, L - front - HW),
                                                   xf_ref.dtype)
        xf_ref[b, :, front:front + HW] = x_ref[b]

        # im2col: one contiguous lane-shifted slice per tap
        for kh in range(KH):
            for kw in range(KW):
                tap = kh * KW + kw
                shift = kw - pad
                start = front - pad * W + kh * W + shift
                piece = xf_ref[b, :, start:start + HW]          # (Cin, HW)
                if shift != 0:                                   # zero wrapped cols
                    piece = jnp.where(masks[shift], piece, 0.0)
                patch_ref[tap * Cin:(tap + 1) * Cin, b * HW:(b + 1) * HW] = piece

    # ---- one (Cout, K) x (K, BT*HW) matmul on the MXU for all BT samples ----
    acc = jnp.dot(w_ref[...], patch_ref[...],
                  preferred_element_type=jnp.float32)            # (Cout, BT*HW)

    # ---- GroupNorm + ReLU (lane-reduce first, then a tiny agg dot) ----
    inv_n = 1.0 / float(HW * cpg)
    agg = agg_ref[...]
    gamma = g_ref[...]
    beta = b_ref[...]
    for b in range(BT):
        a_b = acc[:, b * HW:(b + 1) * HW]                        # (Cout, HW)
        rowsum = jnp.sum(a_b, axis=1, keepdims=True)             # (Cout, 1)  XLU
        mean = jnp.dot(agg, rowsum,
                       preferred_element_type=jnp.float32) * inv_n
        cent = a_b - mean
        rowsq = jnp.sum(cent * cent, axis=1, keepdims=True)      # (Cout, 1)  XLU
        gvar = jnp.dot(agg, rowsq,
                       preferred_element_type=jnp.float32) * inv_n
        scale = gamma * jax.lax.rsqrt(gvar + gn_eps)
        y = cent * scale + beta
        o_ref[b] = jnp.maximum(y, 0.0).astype(o_ref.dtype)       # lane-dense store


def _round_up(x, m):
    return -(x // -m) * m


def _pick_block_batch(n, per_sample_bytes, budget_bytes):
    """Largest divisor of n fitting the VMEM budget, keeping >= 2 grid steps
    when n >= 2 so both v7x TensorCores get work."""
    cap = max(1, budget_bytes // max(per_sample_bytes, 1))
    divs = [d for d in range(1, n + 1) if n % d == 0 and d <= cap]
    pref = [d for d in divs if n // d >= 2]
    return max(pref) if pref else max(divs)
    # TODO(synk): pad the batch instead of requiring a divisor for awkward N.


def basic_conv(x_nchw, w_oihw, gamma, beta, *, padding=1,
               ws_eps=1e-5, gn_eps=1e-5):
    """BasicConv forward: ConvWS2d (stride=1, dil=1, groups=1, bias=False)
    + GroupNorm(out_planes // 16) + ReLU."""
    # TODO(synk): general stride / dilation / conv-groups and non-'same' padding
    # are not implemented (module default 3x3/pad=1 and 1x1/pad=0 paths only).
    # TODO(synk): for large H*W, add a spatial grid axis with a (KH-1)-row halo
    # and two-pass GroupNorm stats so blocks stay under v7x's 64 MiB VMEM.
    N, Cin, H, W = x_nchw.shape
    Cout, Cin_w, KH, KW = w_oihw.shape
    assert Cin_w == Cin
    assert 2 * padding == KH - 1 and 2 * padding == KW - 1, "only 'same' convs supported"
    assert Cout % 16 == 0, "BasicConv uses GroupNorm(out_planes // 16, out_planes)"
    HW = H * W
    # Lane-dense output / aligned patch stores depend on these; pad upstream if not.
    assert HW % 128 == 0, "H*W must be a multiple of 128 (TODO(synk): pad spatial)"
    assert Cin % 8 == 0, "Cin must be a multiple of 8 (TODO(synk): pad channels)"
    num_groups = Cout // 16
    cpg = Cout // num_groups
    K = KH * KW * Cin

    # ---- hoisted weight standardization (one-time, tiny XLA op) ----
    wf = w_oihw.reshape(Cout, -1).astype(jnp.float32)
    w_mean = jnp.mean(wf, axis=1, keepdims=True)
    w_std = jnp.std(wf, axis=1, ddof=1, keepdims=True)       # unbiased, as torch .std()
    w_hat = ((wf - w_mean) / (w_std + ws_eps)).reshape(Cout, Cin, KH, KW)
    # (Cout, Cin, KH, KW) -> (Cout, KH, KW, Cin) -> (Cout, KH*KW*Cin)  (matches tap order)
    w_k = jnp.transpose(w_hat, (0, 2, 3, 1)).reshape(Cout, K).astype(x_nchw.dtype)

    # ---- GroupNorm group-membership matrix (hoisted) ----
    gidx = jnp.arange(Cout) // cpg
    agg = (gidx[:, None] == gidx[None, :]).astype(jnp.float32)   # (Cout, Cout)

    g2 = gamma.reshape(Cout, 1).astype(jnp.float32)
    b2 = beta.reshape(Cout, 1).astype(jnp.float32)

    x_flat = x_nchw.reshape(N, Cin, HW)                      # free: NCHW is contiguous

    # flat-scratch geometry: `front` zeros ahead of the data so every tap slice has
    # a non-negative start; rounded to a lane-tile boundary for aligned stores.
    front = _round_up(padding * W + padding, 128)
    start_max = front - padding * W + (KH - 1) * W + (KW - 1) - padding
    L = _round_up(start_max + HW, 128)

    # ---- pick per-step batch BT under a conservative VMEM budget ----
    itemsize = jnp.dtype(x_nchw.dtype).itemsize
    per_sample_bytes = itemsize * (2 * Cin * HW        # double-buffered input block
                                   + 2 * Cout * HW     # double-buffered output block
                                   + Cin * L           # xf scratch
                                   + K * HW)           # patch scratch
    BT = _pick_block_batch(N, per_sample_bytes, 12 << 20)   # fits v5e's 16 MiB default

    kernel = functools.partial(
        _basic_conv_kernel, H=H, W=W, KH=KH, KW=KW, Cin=Cin, Cout=Cout,
        pad=padding, cpg=cpg, front=front, L=L, BT=BT, gn_eps=gn_eps)

    cost = pl.CostEstimate(
        flops=2 * N * Cout * K * HW + 4 * N * Cout * Cout + 8 * N * Cout * HW,
        transcendentals=N * Cout,
        bytes_accessed=itemsize * (N * Cin * HW + N * Cout * HW)
                       + 4 * (Cout * K + Cout * Cout + 2 * Cout))

    out_flat = pl.pallas_call(
        kernel,
        out_shape=jax.ShapeDtypeStruct((N, Cout, HW), x_nchw.dtype),
        grid_spec=pltpu.PrefetchScalarGridSpec(
            num_scalar_prefetch=0,
            grid=(N // BT,),
            in_specs=[
                pl.BlockSpec((BT, Cin, HW), lambda n: (n, 0, 0)),
                pl.BlockSpec((Cout, K), lambda n: (0, 0)),
                pl.BlockSpec((Cout, Cout), lambda n: (0, 0)),
                pl.BlockSpec((Cout, 1), lambda n: (0, 0)),
                pl.BlockSpec((Cout, 1), lambda n: (0, 0)),
            ],
            out_specs=pl.BlockSpec((BT, Cout, HW), lambda n: (n, 0, 0)),
            scratch_shapes=[
                pltpu.VMEM((BT, Cin, L), x_nchw.dtype),      # row-padded flat inputs
                pltpu.VMEM((K, BT * HW), x_nchw.dtype),      # im2col patch
            ]),
        compiler_params=pltpu.CompilerParams(
            dimension_semantics=("parallel",)),
        cost_estimate=cost,
    )(x_flat, w_k, agg, g2, b2)

    return out_flat.reshape(N, Cout, H, W)                   # already NCHW


def _reference(x_nchw, w_oihw, gamma, beta, padding=1, ws_eps=1e-5, gn_eps=1e-5):
    c_out = w_oihw.shape[0]
    wf = w_oihw.reshape(c_out, -1)
    mean = wf.mean(axis=1).reshape(c_out, 1, 1, 1)
    std = jnp.std(wf, axis=1, ddof=1).reshape(c_out, 1, 1, 1)
    w_hat = (w_oihw - mean) / (std + ws_eps)
    y = jax.lax.conv_general_dilated(
        x_nchw, w_hat, window_strides=(1, 1),
        padding=[(padding, padding), (padding, padding)],
        dimension_numbers=("NCHW", "OIHW", "NCHW"))
    N, C, H, W = y.shape
    G = C // 16
    yg = y.reshape(N, G, C // G, H, W)
    mu = yg.mean(axis=(2, 3, 4), keepdims=True)
    var = ((yg - mu) ** 2).mean(axis=(2, 3, 4), keepdims=True)
    yn = ((yg - mu) / jnp.sqrt(var + gn_eps)).reshape(N, C, H, W)
    yn = yn * gamma.reshape(1, C, 1, 1) + beta.reshape(1, C, 1, 1)
    return jnp.maximum(yn, 0.0)


if __name__ == "__main__":
    # BasicConv(in_planes=16, out_planes=32, kernel_size=3, padding=1)
    N, Cin, H, W = 2, 16, 16, 16
    Cout, KH, KW = 32, 3, 3

    key = jax.random.PRNGKey(0)
    k1, k2, k3, k4 = jax.random.split(key, 4)
    x = jax.random.normal(k1, (N, Cin, H, W), jnp.float32)
    w = 0.1 * jax.random.normal(k2, (Cout, Cin, KH, KW), jnp.float32)
    gamma = 1.0 + 0.1 * jax.random.normal(k3, (Cout,), jnp.float32)
    beta = 0.1 * jax.random.normal(k4, (Cout,), jnp.float32)

    out = basic_conv(x, w, gamma, beta, padding=1)
    out = jax.block_until_ready(out)

    ref = jax.block_until_ready(_reference(x, w, gamma, beta, padding=1))
    assert out.shape == (N, Cout, H, W)
    err = float(jnp.max(jnp.abs(out - ref)))
    assert jnp.allclose(out, ref, rtol=2e-4, atol=2e-4), err
    print("KERNEL_OK")
</pallas_src>

<mosaic_0001>
module attributes {stable_mosaic.version = 11 : i64} {
  func.func @_basic_conv_kernel(%arg0: i32, %arg1: memref<1x16x256xf32, #tpu.memory_space<vmem>>, %arg2: memref<32x144xf32, #tpu.memory_space<vmem>>, %arg3: memref<32x32xf32, #tpu.memory_space<vmem>>, %arg4: memref<32x1xf32, #tpu.memory_space<vmem>>, %arg5: memref<32x1xf32, #tpu.memory_space<vmem>>, %arg6: memref<1x32x256xf32, #tpu.memory_space<vmem>>, %arg7: memref<1x16x512xf32, #tpu.memory_space<vmem>>, %arg8: memref<144x256xf32, #tpu.memory_space<vmem>>) attributes {dimension_semantics = [#tpu.dimension_semantics<parallel>], iteration_bounds = array<i64: 2>, scalar_prefetch = 0 : i64, scratch_operands = 2 : i64, tpu.core_type = #tpu.core_type<tc>, window_params = [{transform_indices = @transform_0, window_bounds = array<i64: 1, 16, 256>}, {pipeline_mode = #tpu.pipeline_mode<synchronous>, transform_indices = @transform_1, window_bounds = array<i64: 32, 144>}, {pipeline_mode = #tpu.pipeline_mode<synchronous>, transform_indices = @transform_2, window_bounds = array<i64: 32, 32>}, {pipeline_mode = #tpu.pipeline_mode<synchronous>, transform_indices = @transform_3, window_bounds = array<i64: 32, 1>}, {pipeline_mode = #tpu.pipeline_mode<synchronous>, transform_indices = @transform_4, window_bounds = array<i64: 32, 1>}, {transform_indices = @transform_5, window_bounds = array<i64: 1, 32, 256>}]} {
    %0 = tpu.iota {dimensions = array<i32: 1>} : vector<16x256xi32>
    %c16_i32 = arith.constant 16 : i32
    %c0_i32 = arith.constant 0 : i32
    %1 = arith.cmpi eq, %c16_i32, %c0_i32 : i32
    %c1_i32 = arith.constant 1 : i32
    %2 = arith.select %1, %c1_i32, %c16_i32 : i32
    %3 = vector.broadcast %2 : i32 to vector<16x256xi32>
    %4 = arith.remsi %0, %3 : vector<16x256xi32>
    %c0_i32_0 = arith.constant 0 : i32
    %5 = vector.broadcast %c0_i32_0 : i32 to vector<16x256xi32>
    %6 = arith.cmpi ne, %4, %5 : vector<16x256xi32>
    %c0_i32_1 = arith.constant 0 : i32
    %7 = vector.broadcast %c0_i32_1 : i32 to vector<16x256xi32>
    %8 = arith.cmpi slt, %4, %7 : vector<16x256xi32>
    %c0_i32_2 = arith.constant 0 : i32
    %9 = arith.cmpi slt, %2, %c0_i32_2 : i32
    %10 = vector.broadcast %9 : i1 to vector<16x256xi1>
    %11 = vector.broadcast %10 : vector<16x256xi1> to vector<16x256xi1>
    %12 = arith.xori %8, %11 : vector<16x256xi1>
    %13 = arith.andi %12, %6 : vector<16x256xi1>
    %14 = vector.broadcast %2 : i32 to vector<16x256xi32>
    %15 = arith.addi %4, %14 : vector<16x256xi32>
    %16 = arith.select %13, %15, %4 : vector<16x256xi1>, vector<16x256xi32>
    %c-1_i32 = arith.constant -1 : i32
    %17 = vector.broadcast %c-1_i32 : i32 to vector<16x256xi32>
    %18 = arith.addi %16, %17 : vector<16x256xi32>
    %c0_i32_3 = arith.constant 0 : i32
    %19 = vector.broadcast %c0_i32_3 : i32 to vector<16x256xi32>
    %20 = arith.cmpi sge, %18, %19 : vector<16x256xi32>
    %c-1_i32_4 = arith.constant -1 : i32
    %21 = vector.broadcast %c-1_i32_4 : i32 to vector<16x256xi32>
    %22 = arith.addi %16, %21 : vector<16x256xi32>
    %c16_i32_5 = arith.constant 16 : i32
    %23 = vector.broadcast %c16_i32_5 : i32 to vector<16x256xi32>
    %24 = arith.cmpi slt, %22, %23 : vector<16x256xi32>
    %25 = arith.andi %20, %24 : vector<16x256xi1>
    %c1_i32_6 = arith.constant 1 : i32
    %26 = vector.broadcast %c1_i32_6 : i32 to vector<16x256xi32>
    %27 = arith.addi %16, %26 : vector<16x256xi32>
    %c0_i32_7 = arith.constant 0 : i32
    %28 = vector.broadcast %c0_i32_7 : i32 to vector<16x256xi32>
    %29 = arith.cmpi sge, %27, %28 : vector<16x256xi32>
    %c1_i32_8 = arith.constant 1 : i32
    %30 = vector.broadcast %c1_i32_8 : i32 to vector<16x256xi32>
    %31 = arith.addi %16, %30 : vector<16x256xi32>
    %c16_i32_9 = arith.constant 16 : i32
    %32 = vector.broadcast %c16_i32_9 : i32 to vector<16x256xi32>
    %33 = arith.cmpi slt, %31, %32 : vector<16x256xi32>
    %34 = arith.andi %29, %33 : vector<16x256xi1>
    %cst = arith.constant 0.000000e+00 : f32
    %35 = vector.broadcast %cst : f32 to vector<16x128xf32>
    %c0 = arith.constant 0 : index
    %c0_10 = arith.constant 0 : index
    %c0_11 = arith.constant 0 : index
    %36 = vector.load %arg7[%c0, %c0_10, %c0_11] : memref<1x16x512xf32, #tpu.memory_space<vmem>>, vector<1x16x128xf32>
    %37 = vector.shape_cast %36 : vector<1x16x128xf32> to vector<16x128xf32>
    %38 = vector.shape_cast %35 : vector<16x128xf32> to vector<1x16x128xf32>
    tpu.vector_store %arg7[%c0, %c0_10, %c0_11], %38 {strides = array<i32>} : memref<1x16x512xf32, #tpu.memory_space<vmem>>, vector<1x16x128xf32>,
    %cst_12 = arith.constant 0.000000e+00 : f32
    %39 = vector.broadcast %cst_12 : f32 to vector<16x128xf32>
    %c0_13 = arith.constant 0 : index
    %c0_14 = arith.constant 0 : index
    %c384 = arith.constant 384 : index
    %40 = vector.load %arg7[%c0_13, %c0_14, %c384] : memref<1x16x512xf32, #tpu.memory_space<vmem>>, vector<1x16x128xf32>
    %41 = vector.shape_cast %40 : vector<1x16x128xf32> to vector<16x128xf32>
    %42 = vector.shape_cast %39 : vector<16x128xf32> to vector<1x16x128xf32>
    tpu.vector_store %arg7[%c0_13, %c0_14, %c384], %42 {strides = array<i32>} : memref<1x16x512xf32, #tpu.memory_space<vmem>>, vector<1x16x128xf32>,
    %c0_15 = arith.constant 0 : index
    %c0_16 = arith.constant 0 : index
    %c0_17 = arith.constant 0 : index
    %43 = vector.load %arg1[%c0_15, %c0_16, %c0_17] : memref<1x16x256xf32, #tpu.memory_space<vmem>>, vector<1x16x256xf32>
    %44 = vector.shape_cast %43 : vector<1x16x256xf32> to vector<16x256xf32>
    %c0_18 = arith.constant 0 : index
    %c0_19 = arith.constant 0 : index
    %c128 = arith.constant 128 : index
    %45 = vector.load %arg7[%c0_18, %c0_19, %c128] : memref<1x16x512xf32, #tpu.memory_space<vmem>>, vector<1x16x256xf32>
    %46 = vector.shape_cast %45 : vector<1x16x256xf32> to vector<16x256xf32>
    %47 = vector.shape_cast %44 : vector<16x256xf32> to vector<1x16x256xf32>
    tpu.vector_store %arg7[%c0_18, %c0_19, %c128], %47 {strides = array<i32>} : memref<1x16x512xf32, #tpu.memory_space<vmem>>, vector<1x16x256xf32>,
    %c0_20 = arith.constant 0 : index
    %c0_21 = arith.constant 0 : index
    %c111 = arith.constant 111 : index
    %48 = vector.load %arg7[%c0_20, %c0_21, %c111] : memref<1x16x512xf32, #tpu.memory_space<vmem>>, vector<1x16x256xf32>
    %49 = vector.shape_cast %48 : vector<1x16x256xf32> to vector<16x256xf32>
    %cst_22 = arith.constant 0.000000e+00 : f32
    %50 = vector.broadcast %cst_22 : f32 to vector<16x256xf32>
    %51 = arith.select %25, %49, %50 : vector<16x256xi1>, vector<16x256xf32>
    %c0_23 = arith.constant 0 : index
    %c0_24 = arith.constant 0 : index
    %52 = vector.load %arg8[%c0_23, %c0_24] : memref<144x256xf32, #tpu.memory_space<vmem>>, vector<16x256xf32>
    tpu.vector_store %arg8[%c0_23, %c0_24], %51 {strides = array<i32>} : memref<144x256xf32, #tpu.memory_space<vmem>>, vector<16x256xf32>,
    %c0_25 = arith.constant 0 : index
    %c0_26 = arith.constant 0 : index
    %c112 = arith.constant 112 : index
    %53 = vector.load %arg7[%c0_25, %c0_26, %c112] : memref<1x16x512xf32, #tpu.memory_space<vmem>>, vector<1x16x256xf32>
    %54 = vector.shape_cast %53 : vector<1x16x256xf32> to vector<16x256xf32>
    %c16 = arith.constant 16 : index
    %c0_27 = arith.constant 0 : index
    %55 = vector.load %arg8[%c16, %c0_27] : memref<144x256xf32, #tpu.memory_space<vmem>>, vector<16x256xf32>
    tpu.vector_store %arg8[%c16, %c0_27], %54 {strides = array<i32>} : memref<144x256xf32, #tpu.memory_space<vmem>>, vector<16x256xf32>,
    %c0_28 = arith.constant 0 : index
    %c0_29 = arith.constant 0 : index
    %c113 = arith.constant 113 : index
    %56 = vector.load %arg7[%c0_28, %c0_29, %c113] : memref<1x16x512xf32, #tpu.memory_space<vmem>>, vector<1x16x256xf32>
    %57 = vector.shape_cast %56 : vector<1x16x256xf32> to vector<16x256xf32>
    %cst_30 = arith.constant 0.000000e+00 : f32
    %58 = vector.broadcast %cst_30 : f32 to vector<16x256xf32>
    %59 = arith.select %34, %57, %58 : vector<16x256xi1>, vector<16x256xf32>
    %c32 = arith.constant 32 : index
    %c0_31 = arith.constant 0 : index
    %60 = vector.load %arg8[%c32, %c0_31] : memref<144x256xf32, #tpu.memory_space<vmem>>, vector<16x256xf32>
    tpu.vector_store %arg8[%c32, %c0_31], %59 {strides = array<i32>} : memref<144x256xf32, #tpu.memory_space<vmem>>, vector<16x256xf32>,
    %c0_32 = arith.constant 0 : index
    %c0_33 = arith.constant 0 : index
    %c127 = arith.constant 127 : index
    %61 = vector.load %arg7[%c0_32, %c0_33, %c127] : memref<1x16x512xf32, #tpu.memory_space<vmem>>, vector<1x16x256xf32>
    %62 = vector.shape_cast %61 : vector<1x16x256xf32> to vector<16x256xf32>
    %cst_34 = arith.constant 0.000000e+00 : f32
    %63 = vector.broadcast %cst_34 : f32 to vector<16x256xf32>
    %64 = arith.select %25, %62, %63 : vector<16x256xi1>, vector<16x256xf32>
    %c48 = arith.constant 48 : index
    %c0_35 = arith.constant 0 : index
    %65 = vector.load %arg8[%c48, %c0_35] : memref<144x256xf32, #tpu.memory_space<vmem>>, vector<16x256xf32>
    tpu.vector_store %arg8[%c48, %c0_35], %64 {strides = array<i32>} : memref<144x256xf32, #tpu.memory_space<vmem>>, vector<16x256xf32>,
    %c0_36 = arith.constant 0 : index
    %c0_37 = arith.constant 0 : index
    %c128_38 = arith.constant 128 : index
    %66 = vector.load %arg7[%c0_36, %c0_37, %c128_38] : memref<1x16x512xf32, #tpu.memory_space<vmem>>, vector<1x16x256xf32>
    %67 = vector.shape_cast %66 : vector<1x16x256xf32> to vector<16x256xf32>
    %c64 = arith.constant 64 : index
    %c0_39 = arith.constant 0 : index
    %68 = vector.load %arg8[%c64, %c0_39] : memref<144x256xf32, #tpu.memory_space<vmem>>, vector<16x256xf32>
    tpu.vector_store %arg8[%c64, %c0_39], %67 {strides = array<i32>} : memref<144x256xf32, #tpu.memory_space<vmem>>, vector<16x256xf32>,
    %c0_40 = arith.constant 0 : index
    %c0_41 = arith.constant 0 : index
    %c129 = arith.constant 129 : index
    %69 = vector.load %arg7[%c0_40, %c0_41, %c129] : memref<1x16x512xf32, #tpu.memory_space<vmem>>, vector<1x16x256xf32>
    %70 = vector.shape_cast %69 : vector<1x16x256xf32> to vector<16x256xf32>
    %cst_42 = arith.constant 0.000000e+00 : f32
    %71 = vector.broadcast %cst_42 : f32 to vector<16x256xf32>
    %72 = arith.select %34, %70, %71 : vector<16x256xi1>, vector<16x256xf32>
    %c80 = arith.constant 80 : index
    %c0_43 = arith.constant 0 : index
    %73 = vector.load %arg8[%c80, %c0_43] : memref<144x256xf32, #tpu.memory_space<vmem>>, vector<16x256xf32>
    tpu.vector_store %arg8[%c80, %c0_43], %72 {strides = array<i32>} : memref<144x256xf32, #tpu.memory_space<vmem>>, vector<16x256xf32>,
    %c0_44 = arith.constant 0 : index
    %c0_45 = arith.constant 0 : index
    %c143 = arith.constant 143 : index
    %74 = vector.load %arg7[%c0_44, %c0_45, %c143] : memref<1x16x512xf32, #tpu.memory_space<vmem>>, vector<1x16x256xf32>
    %75 = vector.shape_cast %74 : vector<1x16x256xf32> to vector<16x256xf32>
    %cst_46 = arith.constant 0.000000e+00 : f32
    %76 = vector.broadcast %cst_46 : f32 to vector<16x256xf32>
    %77 = arith.select %25, %75, %76 : vector<16x256xi1>, vector<16x256xf32>
    %c96 = arith.constant 96 : index
    %c0_47 = arith.constant 0 : index
    %78 = vector.load %arg8[%c96, %c0_47] : memref<144x256xf32, #tpu.memory_space<vmem>>, vector<16x256xf32>
    tpu.vector_store %arg8[%c96, %c0_47], %77 {strides = array<i32>} : memref<144x256xf32, #tpu.memory_space<vmem>>, vector<16x256xf32>,
    %c0_48 = arith.constant 0 : index
    %c0_49 = arith.constant 0 : index
    %c144 = arith.constant 144 : index
    %79 = vector.load %arg7[%c0_48, %c0_49, %c144] : memref<1x16x512xf32, #tpu.memory_space<vmem>>, vector<1x16x256xf32>
    %80 = vector.shape_cast %79 : vector<1x16x256xf32> to vector<16x256xf32>
    %c112_50 = arith.constant 112 : index
    %c0_51 = arith.constant 0 : index
    %81 = vector.load %arg8[%c112_50, %c0_51] : memref<144x256xf32, #tpu.memory_space<vmem>>, vector<16x256xf32>
    tpu.vector_store %arg8[%c112_50, %c0_51], %80 {strides = array<i32>} : memref<144x256xf32, #tpu.memory_space<vmem>>, vector<16x256xf32>,
    %c0_52 = arith.constant 0 : index
    %c0_53 = arith.constant 0 : index
    %c145 = arith.constant 145 : index
    %82 = vector.load %arg7[%c0_52, %c0_53, %c145] : memref<1x16x512xf32, #tpu.memory_space<vmem>>, vector<1x16x256xf32>
    %83 = vector.shape_cast %82 : vector<1x16x256xf32> to vector<16x256xf32>
    %cst_54 = arith.constant 0.000000e+00 : f32
    %84 = vector.broadcast %cst_54 : f32 to vector<16x256xf32>
    %85 = arith.select %34, %83, %84 : vector<16x256xi1>, vector<16x256xf32>
    %c128_55 = arith.constant 128 : index
    %c0_56 = arith.constant 0 : index
    %86 = vector.load %arg8[%c128_55, %c0_56] : memref<144x256xf32, #tpu.memory_space<vmem>>, vector<16x256xf32>
    tpu.vector_store %arg8[%c128_55, %c0_56], %85 {strides = array<i32>} : memref<144x256xf32, #tpu.memory_space<vmem>>, vector<16x256xf32>,
    %c0_57 = arith.constant 0 : index
    %c0_58 = arith.constant 0 : index
    %87 = vector.load %arg2[%c0_57, %c0_58] : memref<32x144xf32, #tpu.memory_space<vmem>>, vector<32x144xf32>
    %c0_59 = arith.constant 0 : index
    %c0_60 = arith.constant 0 : index
    %88 = vector.load %arg8[%c0_59, %c0_60] : memref<144x256xf32, #tpu.memory_space<vmem>>, vector<144x256xf32>
    %cst_61 = arith.constant dense<0.000000e+00> : vector<32x256xf32>
    %89 = tpu.matmul %87, %88, %cst_61 {dimension_numbers = #tpu.dot_dimension_numbers<[1], [0], [0], [1], [0, 0, 1, 1], [], []>} : vector<32x144xf32>, vector<144x256xf32>, vector<32x256xf32> -> vector<32x256xf32>
    %c0_62 = arith.constant 0 : index
    %c0_63 = arith.constant 0 : index
    %90 = vector.load %arg3[%c0_62, %c0_63] : memref<32x32xf32, #tpu.memory_space<vmem>>, vector<32x32xf32>
    %c0_64 = arith.constant 0 : index
    %c0_65 = arith.constant 0 : index
    %91 = vector.load %arg4[%c0_64, %c0_65] : memref<32x1xf32, #tpu.memory_space<vmem>>, vector<32x1xf32>
    %c0_66 = arith.constant 0 : index
    %c0_67 = arith.constant 0 : index
    %92 = vector.load %arg5[%c0_66, %c0_67] : memref<32x1xf32, #tpu.memory_space<vmem>>, vector<32x1xf32>
    %cst_68 = arith.constant dense<0.000000e+00> : vector<32xf32>
    %93 = vector.multi_reduction <add>, %89, %cst_68 [1] : vector<32x256xf32> to vector<32xf32>
    %94 = vector.shape_cast %93 : vector<32xf32> to vector<32x1xf32>
    %cst_69 = arith.constant dense<0.000000e+00> : vector<32x1xf32>
    %95 = tpu.matmul %90, %94, %cst_69 {dimension_numbers = #tpu.dot_dimension_numbers<[1], [0], [0], [1], [0, 0, 1, 1], [], []>} : vector<32x32xf32>, vector<32x1xf32>, vector<32x1xf32> -> vector<32x1xf32>
    %cst_70 = arith.constant 2.44140625E-4 : f32
    %96 = vector.broadcast %cst_70 : f32 to vector<32x1xf32>
    %97 = arith.mulf %95, %96 : vector<32x1xf32>
    %98 = vector.broadcast %97 : vector<32x1xf32> to vector<32x256xf32>
    %99 = arith.subf %89, %98 : vector<32x256xf32>
    %100 = arith.mulf %99, %99 : vector<32x256xf32>
    %cst_71 = arith.constant dense<0.000000e+00> : vector<32xf32>
    %101 = vector.multi_reduction <add>, %100, %cst_71 [1] : vector<32x256xf32> to vector<32xf32>
    %102 = vector.shape_cast %101 : vector<32xf32> to vector<32x1xf32>
    %cst_72 = arith.constant dense<0.000000e+00> : vector<32x1xf32>
    %103 = tpu.matmul %90, %102, %cst_72 {dimension_numbers = #tpu.dot_dimension_numbers<[1], [0], [0], [1], [0, 0, 1, 1], [], []>} : vector<32x32xf32>, vector<32x1xf32>, vector<32x1xf32> -> vector<32x1xf32>
    %cst_73 = arith.constant 2.44140625E-4 : f32
    %104 = vector.broadcast %cst_73 : f32 to vector<32x1xf32>
    %105 = arith.mulf %103, %104 : vector<32x1xf32>
    %cst_74 = arith.constant 9.99999974E-6 : f32
    %106 = vector.broadcast %cst_74 : f32 to vector<32x1xf32>
    %107 = arith.addf %105, %106 : vector<32x1xf32>
    %108 = math.rsqrt %107 : vector<32x1xf32>
    %109 = arith.mulf %91, %108 : vector<32x1xf32>
    %110 = vector.broadcast %109 : vector<32x1xf32> to vector<32x256xf32>
    %111 = arith.mulf %99, %110 : vector<32x256xf32>
    %112 = vector.broadcast %92 : vector<32x1xf32> to vector<32x256xf32>
    %113 = arith.addf %111, %112 : vector<32x256xf32>
    %cst_75 = arith.constant 0.000000e+00 : f32
    %114 = vector.broadcast %cst_75 : f32 to vector<32x256xf32>
    %115 = arith.maximumf %113, %114 : vector<32x256xf32>
    %c0_76 = arith.constant 0 : index
    %c0_77 = arith.constant 0 : index
    %c0_78 = arith.constant 0 : index
    %116 = vector.load %arg6[%c0_76, %c0_77, %c0_78] : memref<1x32x256xf32, #tpu.memory_space<vmem>>, vector<1x32x256xf32>
    %117 = vector.shape_cast %116 : vector<1x32x256xf32> to vector<32x256xf32>
    %118 = vector.shape_cast %115 : vector<32x256xf32> to vector<1x32x256xf32>
    tpu.vector_store %arg6[%c0_76, %c0_77, %c0_78], %118 {strides = array<i32>} : memref<1x32x256xf32, #tpu.memory_space<vmem>>, vector<1x32x256xf32>,
    return
  }
  func.func @transform_0(%arg0: i32) -> (i32, i32, i32) {
    %c0_i32 = arith.constant 0 : i32
    %c0_i32_0 = arith.constant 0 : i32
    %c0_i32_1 = arith.constant 0 : i32
    return %arg0, %c0_i32, %c0_i32_0 : i32, i32, i32
  }
  func.func @transform_1(%arg0: i32) -> (i32, i32) {
    %c0_i32 = arith.constant 0 : i32
    %c0_i32_0 = arith.constant 0 : i32
    %c0_i32_1 = arith.constant 0 : i32
    return %c0_i32, %c0_i32_0 : i32, i32
  }
  func.func @transform_2(%arg0: i32) -> (i32, i32) {
    %c0_i32 = arith.constant 0 : i32
    %c0_i32_0 = arith.constant 0 : i32
    %c0_i32_1 = arith.constant 0 : i32
    return %c0_i32, %c0_i32_0 : i32, i32
  }
  func.func @transform_3(%arg0: i32) -> (i32, i32) {
    %c0_i32 = arith.constant 0 : i32
    %c0_i32_0 = arith.constant 0 : i32
    %c0_i32_1 = arith.constant 0 : i32
    return %c0_i32, %c0_i32_0 : i32, i32
  }
  func.func @transform_4(%arg0: i32) -> (i32, i32) {
    %c0_i32 = arith.constant 0 : i32
    %c0_i32_0 = arith.constant 0 : i32
    %c0_i32_1 = arith.constant 0 : i32
    return %c0_i32, %c0_i32_0 : i32, i32
  }
  func.func @transform_5(%arg0: i32) -> (i32, i32, i32) {
    %c0_i32 = arith.constant 0 : i32
    %c0_i32_0 = arith.constant 0 : i32
    %c0_i32_1 = arith.constant 0 : i32
    return %arg0, %c0_i32, %c0_i32_0 : i32, i32, i32
  }
}

</mosaic_0001>

<llo_original>
// kernel: tpu_custom_call.1
$region0: #{tpu_custom_call.1}
  #allocation0 [shape = 'u32[]', space=smem, size = 0x4, offset = 0x4, fixed_abs, tag = 'smem constant byte address 0x4 - core index']
  #allocation1 [shape = 'u32[72,128]{1,0:T(1,128)}', space=vmem, size = 0x9000, scoped, tag = 'internal scratch']
  #allocation2 [shape = 'f32[1,16,512]{2,1,0:T(8,128)}', space=vmem, size = 0x8000, scoped, tag = 'scratch operand']
  #allocation3 [shape = 'f32[144,256]{1,0:T(8,128)}', space=vmem, size = 0x24000, scoped, tag = 'scratch operand']
  %s0 = inlined_call_operand.vmem [shape: f32[2,16,256], index: 0, kind: input, shape index: {}]
  %s1 = inlined_call_operand.hbm [shape: f32[32,144], index: 1, kind: input, shape index: {}]
  %s2 = inlined_call_operand.hbm [shape: f32[32,32], index: 2, kind: input, shape index: {}]
  %s3 = inlined_call_operand.vmem [shape: f32[32,1], index: 3, kind: input, shape index: {}]
  %s4 = inlined_call_operand.vmem [shape: f32[32,1], index: 4, kind: input, shape index: {}]
  %s5 = inlined_call_operand.hbm [shape: f32[2,32,256], index: 5, kind: output, shape index: {}]
  %s6 = sld [smem:[#allocation0]]
  $region61: #{tpu_custom_call.1} parent=0
    _
  %s8 = ssub.s32 1, %s6
  %s9 = scalar_select 0, %s8, %s6
  $region1: #{tpu_custom_call.1} parent=0
    #allocation4 [shape = 'u8[32768]{0}', space=vmem, size = 0x8000, scoped, tag = 'input window, operand 1, single buffered']
    #allocation5 [shape = 's32[2]{0}', space=sflag, size = 0x8, scoped, tag = 'scoped memory for tpu_custom_call.1']
    #allocation6 [shape = 's32[2]{0}', space=sflag, size = 0x8, scoped, tag = 'scoped memory for tpu_custom_call.1']
    #allocation7 [shape = 'u8[16384]{0}', space=vmem, size = 0x4000, scoped, tag = 'input window, operand 2, single buffered']
    #allocation8 [shape = 's32[1]{0}', space=sflag, size = 0x4, scoped, tag = 'scoped memory for tpu_custom_call.1']
    #allocation9 [shape = 'u8[65536]{0}', space=vmem, size = 0x10000, scoped, tag = 'output window, operand 0']
    %10 = vsyncpa [#allocation5], 0
    %11 = vsyncpa [#allocation8], 0
    %12 = vsyncpa [#allocation6], 0
    %s13 = scalar_lea.sflag [#allocation6], 1
    %14 = vsyncpa %s13, 0
    loop: start=0, step=1, limit=4
    $region2: #{tpu_custom_call.1} parent=1 // loop_pre_header
      _
    $region3: #{tpu_custom_call.1} parent=1 // loop_header
      %s16 = sphi 0, %s20
      %p17 = scmp.ge.s32.totalorder %s16, 4
      %s26 = sphi 0, %s28
      %s29 = sphi 0, %s26
      %s30 = sphi 0, %s29
      %s46 = sphi 0, %s30
      %s50 = sphi 0, %s50
      %s52 = sphi 0, %s50
      %s53 = sphi 0, %s52
      %s67 = sphi 0, %s53
      %s71 = sphi 0, %s71
      %s73 = sphi 0, %s71
      %s74 = sphi 0, %s73
      %s88 = sphi 0, %s74
      %s92 = sphi 0, %s92
      %s94 = sphi 0, %s92
      %s95 = sphi 0, %s94
      %s109 = sphi 0, %s95
      %s113 = sphi 0, %s113
      %s115 = sphi 0, %s113
      %s116 = sphi 0, %s115
      %s130 = sphi 0, %s116
      %s136 = sphi 0, %s138
      %s139 = sphi 0, %s136
      %s140 = sphi 0, %s139
      %s156 = sphi 0, %s140
    $region4: #{tpu_custom_call.1} parent=1 // loop_header_branch
      %19 = sbr.rel (%p17) target = $region8
    $region5: #{tpu_custom_call.1} parent=1 // loop_body
      %s21 = ssub.s32 %s16, 1
      %s22 = ssub.s32 %s16, 2
      %s23 = sadd.s32 %s16, 1
      %s24 = ssub.s32 %s16, %s23
      %p25 = scmp.eq.s32.totalorder %s24, 0
      %s27 = sadd.s32 %s26, 1
      %s28 = scalar_select %p25, %s26, %s27
      %p31 = pneg %p25
      %p32 = scmp.eq.s32.totalorder %s16, 1
      %p33 = por %p31, %p32
      %p34 = scmp.ne.s32.totalorder %s26, %s29
      %p35 = scmp.eq.s32.totalorder %s16, 0
      %p36 = por %p34, %p35
      %p37 = scmp.ne.s32.totalorder %s26, %s29
      %p38 = scmp.eq.s32.totalorder %s21, 1
      %p39 = por %p37, %p38
      %p40 = scmp.ne.s32.totalorder %s29, %s30
      %p41 = scmp.eq.s32.totalorder %s21, 0
      %p42 = por %p40, %p41
      %p43 = scmp.ne.s32.totalorder %s29, %s30
      %p44 = scmp.eq.s32.totalorder %s22, 1
      %p45 = por %p43, %p44
      %p47 = scmp.ne.s32.totalorder %s30, %s46
      %p48 = scmp.eq.s32.totalorder %s22, 0
      %p49 = por %p47, %p48
      %s51 = sadd.s32 %s50, 1
      %p54 = scmp.eq.s32.totalorder %s16, 1
      %p55 = scmp.ne.s32.totalorder %s50, %s52
      %p56 = scmp.eq.s32.totalorder %s16, 0
      %p57 = por %p55, %p56
      %p58 = scmp.ne.s32.totalorder %s50, %s52
      %p59 = scmp.eq.s32.totalorder %s21, 1
      %p60 = por %p58, %p59
      %p61 = scmp.ne.s32.totalorder %s52, %s53
      %p62 = scmp.eq.s32.totalorder %s21, 0
      %p63 = por %p61, %p62
      %p64 = scmp.ne.s32.totalorder %s52, %s53
      %p65 = scmp.eq.s32.totalorder %s22, 1
      %p66 = por %p64, %p65
      %p68 = scmp.ne.s32.totalorder %s53, %s67
      %p69 = scmp.eq.s32.totalorder %s22, 0
      %p70 = por %p68, %p69
      %s72 = sadd.s32 %s71, 1
      %p75 = scmp.eq.s32.totalorder %s16, 1
      %p76 = scmp.ne.s32.totalorder %s71, %s73
      %p77 = scmp.eq.s32.totalorder %s16, 0
      %p78 = por %p76, %p77
      %p79 = scmp.ne.s32.totalorder %s71, %s73
      %p80 = scmp.eq.s32.totalorder %s21, 1
      %p81 = por %p79, %p80
      %p82 = scmp.ne.s32.totalorder %s73, %s74
      %p83 = scmp.eq.s32.totalorder %s21, 0
      %p84 = por %p82, %p83
      %p85 = scmp.ne.s32.totalorder %s73, %s74
      %p86 = scmp.eq.s32.totalorder %s22, 1
      %p87 = por %p85, %p86
      %p89 = scmp.ne.s32.totalorder %s74, %s88
      %p90 = scmp.eq.s32.totalorder %s22, 0
      %p91 = por %p89, %p90
      %s93 = sadd.s32 %s92, 1
      %p96 = scmp.eq.s32.totalorder %s16, 1
      %p97 = scmp.ne.s32.totalorder %s92, %s94
      %p98 = scmp.eq.s32.totalorder %s16, 0
      %p99 = por %p97, %p98
      %p100 = scmp.ne.s32.totalorder %s92, %s94
      %p101 = scmp.eq.s32.totalorder %s21, 1
      %p102 = por %p100, %p101
      %p103 = scmp.ne.s32.totalorder %s94, %s95
      %p104 = scmp.eq.s32.totalorder %s21, 0
      %p105 = por %p103, %p104
      %p106 = scmp.ne.s32.totalorder %s94, %s95
      %p107 = scmp.eq.s32.totalorder %s22, 1
      %p108 = por %p106, %p107
      %p110 = scmp.ne.s32.totalorder %s95, %s109
      %p111 = scmp.eq.s32.totalorder %s22, 0
      %p112 = por %p110, %p111
      %s114 = sadd.s32 %s113, 1
      %p117 = scmp.eq.s32.totalorder %s16, 1
      %p118 = scmp.ne.s32.totalorder %s113, %s115
      %p119 = scmp.eq.s32.totalorder %s16, 0
      %p120 = por %p118, %p119
      %p121 = scmp.ne.s32.totalorder %s113, %s115
      %p122 = scmp.eq.s32.totalorder %s21, 1
      %p123 = por %p121, %p122
      %p124 = scmp.ne.s32.totalorder %s115, %s116
      %p125 = scmp.eq.s32.totalorder %s21, 0
      %p126 = por %p124, %p125
      %p127 = scmp.ne.s32.totalorder %s115, %s116
      %p128 = scmp.eq.s32.totalorder %s22, 1
      %p129 = por %p127, %p128
      %p131 = scmp.ne.s32.totalorder %s116, %s130
      %p132 = scmp.eq.s32.totalorder %s22, 0
      %p133 = por %p131, %p132
      %s134 = ssub.s32 %s16, %s23
      %p135 = scmp.eq.s32.totalorder %s134, 0
      %s137 = sadd.s32 %s136, 1
      %s138 = scalar_select %p135, %s136, %s137
      %p141 = pneg %p135
      %p142 = scmp.eq.s32.totalorder %s16, 1
      %p143 = por %p141, %p142
      %p144 = scmp.ne.s32.totalorder %s136, %s139
      %p145 = scmp.eq.s32.totalorder %s16, 0
      %p146 = por %p144, %p145
      %p147 = scmp.ne.s32.totalorder %s136, %s139
      %p148 = scmp.eq.s32.totalorder %s21, 1
      %p149 = por %p147, %p148
      %p150 = scmp.ne.s32.totalorder %s139, %s140
      %p151 = scmp.eq.s32.totalorder %s21, 0
      %p152 = por %p150, %p151
      %p153 = scmp.ne.s32.totalorder %s139, %s140
      %p154 = scmp.eq.s32.totalorder %s22, 1
      %p155 = por %p153, %p154
      %p157 = scmp.ne.s32.totalorder %s140, %s156
      %p158 = scmp.eq.s32.totalorder %s22, 0
      %p159 = por %p157, %p158
      %p160 = scmp.le.s32.totalorder 1, %s16
      %p161 = scmp.lt.s32.totalorder %s16, 3
      %p162 = pnand %p160, %p161
      %p163 = pneg %p162
      // Predicated region
      $region9: #{tpu_custom_call.1} parent=5 // pred_check
        _
      $region10: #{tpu_custom_call.1} parent=5 // pred_check_branch
        %165 = sbr.rel (%p162) target = $region12
      $region11: #{tpu_custom_call.1} parent=5 // pred_region
        %s166 = ssub.s32 %s16, 1
        // Predicated region
        $region13: #{tpu_custom_call.1} parent=11 // pred_check
          %p167 = pneg %p63
        $region14: #{tpu_custom_call.1} parent=11 // pred_check_branch
          %169 = sbr.rel (%p167) target = $region16
        $region15: #{tpu_custom_call.1} parent=11 // pred_region
          %171 = vsyncadd [#allocation5], 0
          %s172 = sshll.u32 %s1, 4
          %s173 = int_to_ptr.hbm [resolvable:$true] %s172
          %s174 = sshll.u32 [#allocation4], 4
          %s175 = int_to_ptr.vmem [resolvable:$true] %s174
          %180 = dma.hbm_to_vmem [thread:$0]  %s173, 1024, %s175, [#allocation5], 256, 256, 16
        $region16: #{tpu_custom_call.1} parent=11 // pred_fallthru
          _
        // Predicated region
        $region17: #{tpu_custom_call.1} parent=11 // pred_check
          %p181 = pneg %p84
        $region18: #{tpu_custom_call.1} parent=11 // pred_check_branch
          %183 = sbr.rel (%p181) target = $region20
        $region19: #{tpu_custom_call.1} parent=11 // pred_region
          %185 = vsyncadd [#allocation8], 0
          %s186 = sshll.u32 %s2, 4
          %s187 = int_to_ptr.hbm [resolvable:$true] %s186
          %s188 = sshll.u32 [#allocation7], 4
          %s189 = int_to_ptr.vmem [resolvable:$true] %s188
          %194 = dma.hbm_to_vmem [thread:$0]  %s187, 512, %s189, [#allocation8], 128, 128, 8
        $region20: #{tpu_custom_call.1} parent=11 // pred_fallthru
          _
        // Predicated region
        $region21: #{tpu_custom_call.1} parent=11 // pred_check
          %p195 = pneg %p105
        $region22: #{tpu_custom_call.1} parent=11 // pred_check_branch
          %197 = sbr.rel (%p195) target = $region24
        $region23: #{tpu_custom_call.1} parent=11 // pred_region
          _
        $region24: #{tpu_custom_call.1} parent=11 // pred_fallthru
          _
        // Predicated region
        $region25: #{tpu_custom_call.1} parent=11 // pred_check
          %p198 = pneg %p126
        $region26: #{tpu_custom_call.1} parent=11 // pred_check_branch
          %200 = sbr.rel (%p198) target = $region28
        $region27: #{tpu_custom_call.1} parent=11 // pred_region
          _
        $region28: #{tpu_custom_call.1} parent=11 // pred_fallthru
          _
      $region12: #{tpu_custom_call.1} parent=5 // pred_fallthru
        _
      %p201 = scmp.lt.s32.totalorder %s16, 2
      // Predicated region
      $region29: #{tpu_custom_call.1} parent=5 // pred_check
        %p202 = pneg %p201
      $region30: #{tpu_custom_call.1} parent=5 // pred_check_branch
        %204 = sbr.rel (%p202) target = $region32
      $region31: #{tpu_custom_call.1} parent=5 // pred_region
        // Predicated region
        $region33: #{tpu_custom_call.1} parent=31 // pred_check
          %p205 = pneg %p36
        $region34: #{tpu_custom_call.1} parent=31 // pred_check_branch
          %207 = sbr.rel (%p205) target = $region36
        $region35: #{tpu_custom_call.1} parent=31 // pred_region
          %p208 = scmp.lt.s32.totalorder %s16, 1
          %s209 = scalar_select %p208, %s16, 1
          %s210 = smul.addr %s209, 4
          %s211 = smul.addr %s210, 8
          %s212 = scalar_lea.vmem %s0, %s211
        $region36: #{tpu_custom_call.1} parent=31 // pred_fallthru
          _
      $region32: #{tpu_custom_call.1} parent=5 // pred_fallthru
        _
      %p213 = scmp.le.s32.totalorder 1, %s16
      %p214 = scmp.lt.s32.totalorder %s16, 3
      %p215 = pnand %p213, %p214
      %p216 = pneg %p215
      // Predicated region
      $region37: #{tpu_custom_call.1} parent=5 // pred_check
        _
      $region38: #{tpu_custom_call.1} parent=5 // pred_check_branch
        %218 = sbr.rel (%p215) target = $region40
      $region39: #{tpu_custom_call.1} parent=5 // pred_region
        %s219 = ssub.s32 %s16, 1
        // Predicated region
        $region41: #{tpu_custom_call.1} parent=39 // pred_check
          %p220 = pneg %p63
        $region42: #{tpu_custom_call.1} parent=39 // pred_check_branch
          %222 = sbr.rel (%p220) target = $region44
        $region43: #{tpu_custom_call.1} parent=39 // pred_region
          %224 = dma.done [#allocation5], 1024
        $region44: #{tpu_custom_call.1} parent=39 // pred_fallthru
          _
        // Predicated region
        $region45: #{tpu_custom_call.1} parent=39 // pred_check
          %p225 = pneg %p84
        $region46: #{tpu_custom_call.1} parent=39 // pred_check_branch
          %227 = sbr.rel (%p225) target = $region48
        $region47: #{tpu_custom_call.1} parent=39 // pred_region
          %229 = dma.done [#allocation8], 512
        $region48: #{tpu_custom_call.1} parent=39 // pred_fallthru
          _
        %p230 = scmp.lt.s32.totalorder %s21, 1
        %s231 = scalar_select %p230, %s21, 1
        %s232 = smul.addr %s231, 4
        %s233 = smul.addr %s232, 8
        %s234 = scalar_lea.vmem %s0, %s233
        %p235 = pneg %p42
        %p236 = pneg %p39
        %p237 = pneg %p63
        %p238 = pneg %p60
        %p239 = pneg %p84
        %p240 = pneg %p81
        %p241 = pneg %p105
        %p242 = pneg %p102
        %p243 = pneg %p126
        %p244 = pneg %p123
        %p245 = pneg %p152
        %p246 = pneg %p149
        %s247 = sand.u32 %s139, 1
        %s248 = scalar_lea.sflag [#allocation6], %s247
        %s249 = sand.u32 %s139, 1
        %s250 = smul.addr %s249, 64
        %s251 = scalar_lea.vmem [#allocation9], %s250
        %p252 = scmp.lt.s32.totalorder %s21, 1
        %s253 = scalar_select %p252, %s21, 1
        %s254 = smul.addr %s253, 4
        %s255 = smul.addr %s254, 8
        %s256 = scalar_lea.vmem %s0, %s255
        %v257 = vlaneseq
        %v258 = vand.u32 %v257, 127
        %v259 = vadd.s32 %v258, 128
        %vm260 = vcmp.lt.s32.totalorder %v258, 0
        %v261 = vsub.s32 0, %v258
        %v262 = vsel %vm260, %v261, %v258
        %v263 = vshrl.u32 %v262, 4
        %v264 = vand.u32 %v262, 15
        %v265 = vsub.s32 0, %v264
        %v266 = vsel %vm260, %v265, %v264
        %vm267 = vcmp.lt.s32.totalorder %v259, 0
        %v268 = vsub.s32 0, %v259
        %v269 = vsel %vm267, %v268, %v259
        %v270 = vshrl.u32 %v269, 4
        %v271 = vand.u32 %v269, 15
        %v272 = vsub.s32 0, %v271
        %v273 = vsel %vm267, %v272, %v271
        %vm274 = vcmp.ne.s32.totalorder %v266, 0
        %vm275 = vcmp.ne.s32.totalorder %v273, 0
        %vm276 = vcmp.lt.s32.totalorder %v266, 0
        %vm277 = vcmp.lt.s32.totalorder %v273, 0
        %vm278 = vmand %vm276, %vm274
        %vm279 = vmand %vm277, %vm275
        %v280 = vadd.s32 %v266, 16
        %v281 = vadd.s32 %v273, 16
        %v282 = vsel %vm278, %v280, %v266
        %v283 = vsel %vm279, %v281, %v273
        %v284 = vadd.s32 %v282, 4294967295
        %v285 = vadd.s32 %v283, 4294967295
        %vm286 = vcmp.ge.s32.totalorder %v284, 0
        %vm287 = vcmp.ge.s32.totalorder %v285, 0
        %vm288 = vcmp.lt.s32.totalorder %v284, 16
        %vm289 = vcmp.lt.s32.totalorder %v285, 16
        %vm290 = vmand %vm286, %vm288
        %vm291 = vmand %vm287, %vm289
        %v292 = vadd.s32 %v282, 1
        %v293 = vadd.s32 %v283, 1
        %vm294 = vcmp.ge.s32.totalorder %v292, 0
        %vm295 = vcmp.ge.s32.totalorder %v293, 0
        %vm296 = vcmp.lt.s32.totalorder %v292, 16
        %vm297 = vcmp.lt.s32.totalorder %v293, 16
        %vm298 = vmand %vm294, %vm296
        %vm299 = vmand %vm295, %vm297
        %300 = vst [vmem:[#allocation2] sm:$0xff] 0.0
        %301 = vst [vmem:[#allocation2 + $0x20] sm:$0xff] 0.0
        %302 = vst [vmem:[#allocation2 + $0x18] sm:$0xff] 0.0
        %303 = vst [vmem:[#allocation2 + $0x38] sm:$0xff] 0.0
        %v304 = vld [vmem:[%s256] sm:$0xff]
        %v305 = vld [vmem:[%s256 + $0x8] sm:$0xff]
        %v306 = vld [vmem:[%s256 + $0x10] sm:$0xff]
        %v307 = vld [vmem:[%s256 + $0x18] sm:$0xff]
        %308 = vst [vmem:[#allocation2 + $0x8] sm:$0xff] %v304
        %309 = vst [vmem:[#allocation2 + $0x10] sm:$0xff] %v305
        %310 = vst [vmem:[#allocation2 + $0x28] sm:$0xff] %v306
        %311 = vst [vmem:[#allocation2 + $0x30] sm:$0xff] %v307
        %v312 = vld [vmem:[#allocation2] sm:$0xff]
        %v313 = vld [vmem:[#allocation2 + $0x8] sm:$0xff]
        %v314 = vld [vmem:[#allocation2 + $0x10] sm:$0xff]
        %v315 = vld [vmem:[#allocation2 + $0x20] sm:$0xff]
        %v316 = vld [vmem:[#allocation2 + $0x28] sm:$0xff]
        %v317 = vld [vmem:[#allocation2 + $0x30] sm:$0xff]
        %324 = vrot.lane.b32.xlu0 %v312, 17
        %v325 = vpop.permute.xlu0 %324
        %326 = vrot.lane.b32.xlu0 %v313, 17
        %v327 = vpop.permute.xlu0 %326
        %328 = vrot.lane.b32.xlu0 %v314, 17
        %v329 = vpop.permute.xlu0 %328
        %330 = vrot.lane.b32.xlu0 %v315, 17
        %v331 = vpop.permute.xlu0 %330
        %332 = vrot.lane.b32.xlu0 %v316, 17
        %v333 = vpop.permute.xlu0 %332
        %334 = vrot.lane.b32.xlu0 %v317, 17
        %v335 = vpop.permute.xlu0 %334
        %vm336 = vcmask 138240
        %v337 = vsel %vm336, %v325, %v327
        %v338 = vsel %vm336, %v327, %v329
        %v339 = vsel %vm336, %v331, %v333
        %v340 = vsel %vm336, %v333, %v335
        %v345 = vsel %vm290, %v337, 0.0
        %v346 = vsel %vm291, %v338, 0.0
        %v347 = vsel %vm290, %v339, 0.0
        %v348 = vsel %vm291, %v340, 0.0
        %349 = vst [vmem:[#allocation3] sm:$0xff] %v345
        %350 = vst [vmem:[#allocation3 + $0x8] sm:$0xff] %v346
        %351 = vst [vmem:[#allocation3 + $0x10] sm:$0xff] %v347
        %352 = vst [vmem:[#allocation3 + $0x18] sm:$0xff] %v348
        %v353 = vld [vmem:[#allocation2] sm:$0xff]
        %v354 = vld [vmem:[#allocation2 + $0x8] sm:$0xff]
        %v355 = vld [vmem:[#allocation2 + $0x10] sm:$0xff]
        %v356 = vld [vmem:[#allocation2 + $0x20] sm:$0xff]
        %v357 = vld [vmem:[#allocation2 + $0x28] sm:$0xff]
        %v358 = vld [vmem:[#allocation2 + $0x30] sm:$0xff]
        %365 = vrot.lane.b32.xlu0 %v353, 16
        %v366 = vpop.permute.xlu0 %365
        %367 = vrot.lane.b32.xlu0 %v354, 16
        %v368 = vpop.permute.xlu0 %367
        %369 = vrot.lane.b32.xlu0 %v355, 16
        %v370 = vpop.permute.xlu0 %369
        %371 = vrot.lane.b32.xlu0 %v356, 16
        %v372 = vpop.permute.xlu0 %371
        %373 = vrot.lane.b32.xlu0 %v357, 16
        %v374 = vpop.permute.xlu0 %373
        %375 = vrot.lane.b32.xlu0 %v358, 16
        %v376 = vpop.permute.xlu0 %375
        %vm377 = vcmask 130048
        %v378 = vsel %vm377, %v366, %v368
        %v379 = vsel %vm377, %v368, %v370
        %v380 = vsel %vm377, %v372, %v374
        %v381 = vsel %vm377, %v374, %v376
        %386 = vst [vmem:[#allocation3 + $0x20] sm:$0xff] %v378
        %387 = vst [vmem:[#allocation3 + $0x28] sm:$0xff] %v379
        %388 = vst [vmem:[#allocation3 + $0x30] sm:$0xff] %v380
        %389 = vst [vmem:[#allocation3 + $0x38] sm:$0xff] %v381
        %v390 = vld [vmem:[#allocation2] sm:$0xff]
        %v391 = vld [vmem:[#allocation2 + $0x8] sm:$0xff]
        %v392 = vld [vmem:[#allocation2 + $0x10] sm:$0xff]
        %v393 = vld [vmem:[#allocation2 + $0x20] sm:$0xff]
        %v394 = vld [vmem:[#allocation2 + $0x28] sm:$0xff]
        %v395 = vld [vmem:[#allocation2 + $0x30] sm:$0xff]
        %402 = vrot.lane.b32.xlu0 %v390, 15
        %v403 = vpop.permute.xlu0 %402
        %404 = vrot.lane.b32.xlu0 %v391, 15
        %v405 = vpop.permute.xlu0 %404
        %406 = vrot.lane.b32.xlu0 %v392, 15
        %v407 = vpop.permute.xlu0 %406
        %408 = vrot.lane.b32.xlu0 %v393, 15
        %v409 = vpop.permute.xlu0 %408
        %410 = vrot.lane.b32.xlu0 %v394, 15
        %v411 = vpop.permute.xlu0 %410
        %412 = vrot.lane.b32.xlu0 %v395, 15
        %v413 = vpop.permute.xlu0 %412
        %vm414 = vcmask 121856
        %v415 = vsel %vm414, %v403, %v405
        %v416 = vsel %vm414, %v405, %v407
        %v417 = vsel %vm414, %v409, %v411
        %v418 = vsel %vm414, %v411, %v413
        %v423 = vsel %vm298, %v415, 0.0
        %v424 = vsel %vm299, %v416, 0.0
        %v425 = vsel %vm298, %v417, 0.0
        %v426 = vsel %vm299, %v418, 0.0
        %427 = vst [vmem:[#allocation3 + $0x40] sm:$0xff] %v423
        %428 = vst [vmem:[#allocation3 + $0x48] sm:$0xff] %v424
        %429 = vst [vmem:[#allocation3 + $0x50] sm:$0xff] %v425
        %430 = vst [vmem:[#allocation3 + $0x58] sm:$0xff] %v426
        %v431 = vld [vmem:[#allocation2] sm:$0xff]
        %v432 = vld [vmem:[#allocation2 + $0x8] sm:$0xff]
        %v433 = vld [vmem:[#allocation2 + $0x10] sm:$0xff]
        %v434 = vld [vmem:[#allocation2 + $0x20] sm:$0xff]
        %v435 = vld [vmem:[#allocation2 + $0x28] sm:$0xff]
        %v436 = vld [vmem:[#allocation2 + $0x30] sm:$0xff]
        %443 = vrot.lane.b32.xlu0 %v431, 1
        %v444 = vpop.permute.xlu0 %443
        %445 = vrot.lane.b32.xlu0 %v432, 1
        %v446 = vpop.permute.xlu0 %445
        %447 = vrot.lane.b32.xlu0 %v433, 1
        %v448 = vpop.permute.xlu0 %447
        %449 = vrot.lane.b32.xlu0 %v434, 1
        %v450 = vpop.permute.xlu0 %449
        %451 = vrot.lane.b32.xlu0 %v435, 1
        %v452 = vpop.permute.xlu0 %451
        %453 = vrot.lane.b32.xlu0 %v436, 1
        %v454 = vpop.permute.xlu0 %453
        %vm455 = vcmask 7168
        %v456 = vsel %vm455, %v444, %v446
        %v457 = vsel %vm455, %v446, %v448
        %v458 = vsel %vm455, %v450, %v452
        %v459 = vsel %vm455, %v452, %v454
        %v464 = vsel %vm290, %v456, 0.0
        %v465 = vsel %vm291, %v457, 0.0
        %v466 = vsel %vm290, %v458, 0.0
        %v467 = vsel %vm291, %v459, 0.0
        %468 = vst [vmem:[#allocation3 + $0x60] sm:$0xff] %v464
        %469 = vst [vmem:[#allocation3 + $0x68] sm:$0xff] %v465
        %470 = vst [vmem:[#allocation3 + $0x70] sm:$0xff] %v466
        %471 = vst [vmem:[#allocation3 + $0x78] sm:$0xff] %v467
        %v472 = vld [vmem:[#allocation2 + $0x8] sm:$0xff]
        %v473 = vld [vmem:[#allocation2 + $0x10] sm:$0xff]
        %v474 = vld [vmem:[#allocation2 + $0x28] sm:$0xff]
        %v475 = vld [vmem:[#allocation2 + $0x30] sm:$0xff]
        %476 = vst [vmem:[#allocation3 + $0x80] sm:$0xff] %v472
        %477 = vst [vmem:[#allocation3 + $0x88] sm:$0xff] %v473
        %478 = vst [vmem:[#allocation3 + $0x90] sm:$0xff] %v474
        %479 = vst [vmem:[#allocation3 + $0x98] sm:$0xff] %v475
        %v480 = vld [vmem:[#allocation2 + $0x8] sm:$0xff]
        %v481 = vld [vmem:[#allocation2 + $0x10] sm:$0xff]
        %v482 = vld [vmem:[#allocation2 + $0x18] sm:$0xff]
        %v483 = vld [vmem:[#allocation2 + $0x28] sm:$0xff]
        %v484 = vld [vmem:[#allocation2 + $0x30] sm:$0xff]
        %v485 = vld [vmem:[#allocation2 + $0x38] sm:$0xff]
        %492 = vrot.lane.b32.xlu0 %v480, 127
        %v493 = vpop.permute.xlu0 %492
        %494 = vrot.lane.b32.xlu0 %v481, 127
        %v495 = vpop.permute.xlu0 %494
        %496 = vrot.lane.b32.xlu0 %v482, 127
        %v497 = vpop.permute.xlu0 %496
        %498 = vrot.lane.b32.xlu0 %v483, 127
        %v499 = vpop.permute.xlu0 %498
        %500 = vrot.lane.b32.xlu0 %v484, 127
        %v501 = vpop.permute.xlu0 %500
        %502 = vrot.lane.b32.xlu0 %v485, 127
        %v503 = vpop.permute.xlu0 %502
        %vm504 = vcmask 1039360
        %v505 = vsel %vm504, %v493, %v495
        %v506 = vsel %vm504, %v495, %v497
        %v507 = vsel %vm504, %v499, %v501
        %v508 = vsel %vm504, %v501, %v503
        %v513 = vsel %vm298, %v505, 0.0
        %v514 = vsel %vm299, %v506, 0.0
        %v515 = vsel %vm298, %v507, 0.0
        %v516 = vsel %vm299, %v508, 0.0
        %517 = vst [vmem:[#allocation3 + $0xa0] sm:$0xff] %v513
        %518 = vst [vmem:[#allocation3 + $0xa8] sm:$0xff] %v514
        %519 = vst [vmem:[#allocation3 + $0xb0] sm:$0xff] %v515
        %520 = vst [vmem:[#allocation3 + $0xb8] sm:$0xff] %v516
        %v521 = vld [vmem:[#allocation2 + $0x8] sm:$0xff]
        %v522 = vld [vmem:[#allocation2 + $0x10] sm:$0xff]
        %v523 = vld [vmem:[#allocation2 + $0x18] sm:$0xff]
        %v524 = vld [vmem:[#allocation2 + $0x28] sm:$0xff]
        %v525 = vld [vmem:[#allocation2 + $0x30] sm:$0xff]
        %v526 = vld [vmem:[#allocation2 + $0x38] sm:$0xff]
        %533 = vrot.lane.b32.xlu0 %v521, 113
        %v534 = vpop.permute.xlu0 %533
        %535 = vrot.lane.b32.xlu0 %v522, 113
        %v536 = vpop.permute.xlu0 %535
        %537 = vrot.lane.b32.xlu0 %v523, 113
        %v538 = vpop.permute.xlu0 %537
        %539 = vrot.lane.b32.xlu0 %v524, 113
        %v540 = vpop.permute.xlu0 %539
        %541 = vrot.lane.b32.xlu0 %v525, 113
        %v542 = vpop.permute.xlu0 %541
        %543 = vrot.lane.b32.xlu0 %v526, 113
        %v544 = vpop.permute.xlu0 %543
        %vm545 = vcmask 924672
        %v546 = vsel %vm545, %v534, %v536
        %v547 = vsel %vm545, %v536, %v538
        %v548 = vsel %vm545, %v540, %v542
        %v549 = vsel %vm545, %v542, %v544
        %v554 = vsel %vm290, %v546, 0.0
        %v555 = vsel %vm291, %v547, 0.0
        %v556 = vsel %vm290, %v548, 0.0
        %v557 = vsel %vm291, %v549, 0.0
        %558 = vst [vmem:[#allocation3 + $0xc0] sm:$0xff] %v554
        %559 = vst [vmem:[#allocation3 + $0xc8] sm:$0xff] %v555
        %560 = vst [vmem:[#allocation3 + $0xd0] sm:$0xff] %v556
        %561 = vst [vmem:[#allocation3 + $0xd8] sm:$0xff] %v557
        %v562 = vld [vmem:[#allocation2 + $0x8] sm:$0xff]
        %v563 = vld [vmem:[#allocation2 + $0x10] sm:$0xff]
        %v564 = vld [vmem:[#allocation2 + $0x18] sm:$0xff]
        %v565 = vld [vmem:[#allocation2 + $0x28] sm:$0xff]
        %v566 = vld [vmem:[#allocation2 + $0x30] sm:$0xff]
        %v567 = vld [vmem:[#allocation2 + $0x38] sm:$0xff]
        %574 = vrot.lane.b32.xlu0 %v562, 112
        %v575 = vpop.permute.xlu0 %574
        %576 = vrot.lane.b32.xlu0 %v563, 112
        %v577 = vpop.permute.xlu0 %576
        %578 = vrot.lane.b32.xlu0 %v564, 112
        %v579 = vpop.permute.xlu0 %578
        %580 = vrot.lane.b32.xlu0 %v565, 112
        %v581 = vpop.permute.xlu0 %580
        %582 = vrot.lane.b32.xlu0 %v566, 112
        %v583 = vpop.permute.xlu0 %582
        %584 = vrot.lane.b32.xlu0 %v567, 112
        %v585 = vpop.permute.xlu0 %584
        %vm586 = vcmask 916480
        %v587 = vsel %vm586, %v575, %v577
        %v588 = vsel %vm586, %v577, %v579
        %v589 = vsel %vm586, %v581, %v583
        %v590 = vsel %vm586, %v583, %v585
        %595 = vst [vmem:[#allocation3 + $0xe0] sm:$0xff] %v587
        %596 = vst [vmem:[#allocation3 + $0xe8] sm:$0xff] %v588
        %597 = vst [vmem:[#allocation3 + $0xf0] sm:$0xff] %v589
        %598 = vst [vmem:[#allocation3 + $0xf8] sm:$0xff] %v590
        %v599 = vld [vmem:[#allocation2 + $0x8] sm:$0xff]
        %v600 = vld [vmem:[#allocation2 + $0x10] sm:$0xff]
        %v601 = vld [vmem:[#allocation2 + $0x18] sm:$0xff]
        %v602 = vld [vmem:[#allocation2 + $0x28] sm:$0xff]
        %v603 = vld [vmem:[#allocation2 + $0x30] sm:$0xff]
        %v604 = vld [vmem:[#allocation2 + $0x38] sm:$0xff]
        %611 = vrot.lane.b32.xlu0 %v599, 111
        %v612 = vpop.permute.xlu0 %611
        %613 = vrot.lane.b32.xlu0 %v600, 111
        %v614 = vpop.permute.xlu0 %613
        %615 = vrot.lane.b32.xlu0 %v601, 111
        %v616 = vpop.permute.xlu0 %615
        %617 = vrot.lane.b32.xlu0 %v602, 111
        %v618 = vpop.permute.xlu0 %617
        %619 = vrot.lane.b32.xlu0 %v603, 111
        %v620 = vpop.permute.xlu0 %619
        %621 = vrot.lane.b32.xlu0 %v604, 111
        %v622 = vpop.permute.xlu0 %621
        %vm623 = vcmask 908288
        %v624 = vsel %vm623, %v612, %v614
        %v625 = vsel %vm623, %v614, %v616
        %v626 = vsel %vm623, %v618, %v620
        %v627 = vsel %vm623, %v620, %v622
        %v632 = vsel %vm298, %v624, 0.0
        %v633 = vsel %vm299, %v625, 0.0
        %v634 = vsel %vm298, %v626, 0.0
        %v635 = vsel %vm299, %v627, 0.0
        %636 = vst [vmem:[#allocation3 + $0x100] sm:$0xff] %v632
        %637 = vst [vmem:[#allocation3 + $0x108] sm:$0xff] %v633
        %638 = vst [vmem:[#allocation3 + $0x110] sm:$0xff] %v634
        %639 = vst [vmem:[#allocation3 + $0x118] sm:$0xff] %v635
        %v640 = vld [vmem:[#allocation4] sm:$0xff]
        %v641 = vld [vmem:[#allocation4 + $0x8] sm:$0xff]
        %v642 = vld [vmem:[#allocation4 + $0x10] sm:$0xff]
        %v643 = vld [vmem:[#allocation4 + $0x18] sm:$0xff]
        %v644 = vld [vmem:[#allocation4 + $0x20] sm:$0xff]
        %v645 = vld [vmem:[#allocation4 + $0x28] sm:$0xff]
        %v646 = vld [vmem:[#allocation4 + $0x30] sm:$0xff]
        %v647 = vld [vmem:[#allocation4 + $0x38] sm:$0xff]
        %v648 = vld [vmem:[#allocation3] sm:$0xff]
        %v649 = vld [vmem:[#allocation3 + $0x8] sm:$0xff]
        %v650 = vld [vmem:[#allocation3 + $0x10] sm:$0xff]
        %v651 = vld [vmem:[#allocation3 + $0x18] sm:$0xff]
        %v652 = vld [vmem:[#allocation3 + $0x20] sm:$0xff]
        %v653 = vld [vmem:[#allocation3 + $0x28] sm:$0xff]
        %v654 = vld [vmem:[#allocation3 + $0x30] sm:$0xff]
        %v655 = vld [vmem:[#allocation3 + $0x38] sm:$0xff]
        %v656 = vld [vmem:[#allocation3 + $0x40] sm:$0xff]
        %v657 = vld [vmem:[#allocation3 + $0x48] sm:$0xff]
        %v658 = vld [vmem:[#allocation3 + $0x50] sm:$0xff]
        %v659 = vld [vmem:[#allocation3 + $0x58] sm:$0xff]
        %v660 = vld [vmem:[#allocation3 + $0x60] sm:$0xff]
        %v661 = vld [vmem:[#allocation3 + $0x68] sm:$0xff]
        %v662 = vld [vmem:[#allocation3 + $0x70] sm:$0xff]
        %v663 = vld [vmem:[#allocation3 + $0x78] sm:$0xff]
        %v664 = vld [vmem:[#allocation3 + $0x80] sm:$0xff]
        %v665 = vld [vmem:[#allocation3 + $0x88] sm:$0xff]
        %v666 = vld [vmem:[#allocation3 + $0x90] sm:$0xff]
        %v667 = vld [vmem:[#allocation3 + $0x98] sm:$0xff]
        %v668 = vld [vmem:[#allocation3 + $0xa0] sm:$0xff]
        %v669 = vld [vmem:[#allocation3 + $0xa8] sm:$0xff]
        %v670 = vld [vmem:[#allocation3 + $0xb0] sm:$0xff]
        %v671 = vld [vmem:[#allocation3 + $0xb8] sm:$0xff]
        %v672 = vld [vmem:[#allocation3 + $0xc0] sm:$0xff]
        %v673 = vld [vmem:[#allocation3 + $0xc8] sm:$0xff]
        %v674 = vld [vmem:[#allocation3 + $0xd0] sm:$0xff]
        %v675 = vld [vmem:[#allocation3 + $0xd8] sm:$0xff]
        %v676 = vld [vmem:[#allocation3 + $0xe0] sm:$0xff]
        %v677 = vld [vmem:[#allocation3 + $0xe8] sm:$0xff]
        %v678 = vld [vmem:[#allocation3 + $0xf0] sm:$0xff]
        %v679 = vld [vmem:[#allocation3 + $0xf8] sm:$0xff]
        %v680 = vld [vmem:[#allocation3 + $0x100] sm:$0xff]
        %v681 = vld [vmem:[#allocation3 + $0x108] sm:$0xff]
        %v682 = vld [vmem:[#allocation3 + $0x110] sm:$0xff]
        %v683 = vld [vmem:[#allocation3 + $0x118] sm:$0xff]
        %v685 = vsel %vm377, %v641, 0
        %v688 = vsel %vm377, %v643, 0
        %v691 = vsel %vm377, %v645, 0
        %v694 = vsel %vm377, %v647, 0
        %696 = vmatpush.msra.mxu0 %v678
        %697 = vmatpush.msra.mxu0 %v676
        %698 = vmatpush.msra.mxu0 %v674
        %699 = vmatpush.msra.mxu0 %v672
        %700 = vmatpush.msra.mxu0 %v670
        %701 = vmatpush.msra.mxu0 %v668
        %702 = vmatpush.msra.mxu0 %v666
        %703 = vmatpush.msra.mxu0 %v664
        %704 = vmatpush.msra.mxu0 %v662
        %705 = vmatpush.msra.mxu0 %v660
        %706 = vmatpush.msra.mxu0 %v658
        %707 = vmatpush.msra.mxu0 %v656
        %708 = vmatpush.msra.mxu0 %v654
        %709 = vmatpush.msra.mxu0 %v652
        %710 = vmatpush.msra.mxu0 %v650
        %711 = vmatpush.msra.mxu0 %v648
        %712 = vmatmul.f32.gmra.mxu0 %v640
        %v713 = vpop.f32.mrf.mxu0
        %v714 = vadd.f32 0.0, %v713
        %715 = vmatmul.f32.gmra.mxu0 %v642
        %v716 = vpop.f32.mrf.mxu0
        %v717 = vadd.f32 0.0, %v716
        %718 = vmatmul.f32.gmra.mxu0 %v644
        %v719 = vpop.f32.mrf.mxu0
        %v720 = vadd.f32 0.0, %v719
        %721 = vmatmul.f32.gmra.mxu0 %v646
        %v722 = vpop.f32.mrf.mxu0
        %v723 = vadd.f32 0.0, %v722
        %724 = vdwg.mxu0
        %725 = vmatpush.msra.mxu0 0.0
        %726 = vmatpush.msra.mxu0 0.0
        %727 = vmatpush.msra.mxu0 0.0
        %728 = vmatpush.msra.mxu0 0.0
        %729 = vmatpush.msra.mxu0 0.0
        %730 = vmatpush.msra.mxu0 0.0
        %731 = vmatpush.msra.mxu0 0.0
        %732 = vmatpush.msra.mxu0 0.0
        %733 = vmatpush.msra.mxu0 0.0
        %734 = vmatpush.msra.mxu0 0.0
        %735 = vmatpush.msra.mxu0 0.0
        %736 = vmatpush.msra.mxu0 0.0
        %737 = vmatpush.msra.mxu0 0.0
        %738 = vmatpush.msra.mxu0 0.0
        %739 = vmatpush.msra.mxu0 %v682
        %740 = vmatpush.msra.mxu0 %v680
        %741 = vmatmul.f32.gmra.mxu0 %v685
        %v742 = vpop.f32.mrf.mxu0
        %v743 = vadd.f32 %v714, %v742
        %744 = vmatmul.f32.gmra.mxu0 %v688
        %v745 = vpop.f32.mrf.mxu0
        %v746 = vadd.f32 %v717, %v745
        %747 = vmatmul.f32.gmra.mxu0 %v691
        %v748 = vpop.f32.mrf.mxu0
        %v749 = vadd.f32 %v720, %v748
        %750 = vmatmul.f32.gmra.mxu0 %v694
        %v751 = vpop.f32.mrf.mxu0
        %v752 = vadd.f32 %v723, %v751
        %753 = vdwg.mxu0
        %754 = vmatpush.msra.mxu0 %v679
        %755 = vmatpush.msra.mxu0 %v677
        %756 = vmatpush.msra.mxu0 %v675
        %757 = vmatpush.msra.mxu0 %v673
        %758 = vmatpush.msra.mxu0 %v671
        %759 = vmatpush.msra.mxu0 %v669
        %760 = vmatpush.msra.mxu0 %v667
        %761 = vmatpush.msra.mxu0 %v665
        %762 = vmatpush.msra.mxu0 %v663
        %763 = vmatpush.msra.mxu0 %v661
        %764 = vmatpush.msra.mxu0 %v659
        %765 = vmatpush.msra.mxu0 %v657
        %766 = vmatpush.msra.mxu0 %v655
        %767 = vmatpush.msra.mxu0 %v653
        %768 = vmatpush.msra.mxu0 %v651
        %769 = vmatpush.msra.mxu0 %v649
        %770 = vmatmul.f32.gmra.mxu0 %v640
        %v771 = vpop.f32.mrf.mxu0
        %v772 = vadd.f32 0.0, %v771
        %773 = vmatmul.f32.gmra.mxu0 %v642
        %v774 = vpop.f32.mrf.mxu0
        %v775 = vadd.f32 0.0, %v774
        %776 = vmatmul.f32.gmra.mxu0 %v644
        %v777 = vpop.f32.mrf.mxu0
        %v778 = vadd.f32 0.0, %v777
        %779 = vmatmul.f32.gmra.mxu0 %v646
        %v780 = vpop.f32.mrf.mxu0
        %v781 = vadd.f32 0.0, %v780
        %782 = vdwg.mxu0
        %783 = vmatpush.msra.mxu0 0.0
        %784 = vmatpush.msra.mxu0 0.0
        %785 = vmatpush.msra.mxu0 0.0
        %786 = vmatpush.msra.mxu0 0.0
        %787 = vmatpush.msra.mxu0 0.0
        %788 = vmatpush.msra.mxu0 0.0
        %789 = vmatpush.msra.mxu0 0.0
        %790 = vmatpush.msra.mxu0 0.0
        %791 = vmatpush.msra.mxu0 0.0
        %792 = vmatpush.msra.mxu0 0.0
        %793 = vmatpush.msra.mxu0 0.0
        %794 = vmatpush.msra.mxu0 0.0
        %795 = vmatpush.msra.mxu0 0.0
        %796 = vmatpush.msra.mxu0 0.0
        %797 = vmatpush.msra.mxu0 %v683
        %798 = vmatpush.msra.mxu0 %v681
        %799 = vmatmul.f32.gmra.mxu0 %v685
        %v800 = vpop.f32.mrf.mxu0
        %v801 = vadd.f32 %v772, %v800
        %802 = vmatmul.f32.gmra.mxu0 %v688
        %v803 = vpop.f32.mrf.mxu0
        %v804 = vadd.f32 %v775, %v803
        %805 = vmatmul.f32.gmra.mxu0 %v691
        %v806 = vpop.f32.mrf.mxu0
        %v807 = vadd.f32 %v778, %v806
        %808 = vmatmul.f32.gmra.mxu0 %v694
        %v809 = vpop.f32.mrf.mxu0
        %v810 = vadd.f32 %v781, %v809
        %811 = vdwg.mxu0
        %v812 = vld [vmem:[#allocation7] sm:$0xff]
        %v813 = vld [vmem:[#allocation7 + $0x8] sm:$0xff]
        %v814 = vld [vmem:[#allocation7 + $0x10] sm:$0xff]
        %v815 = vld [vmem:[#allocation7 + $0x18] sm:$0xff]
        %v816 = vld [vmem:[%s3] sm:$0xff]
        %v817 = vld [vmem:[%s3 + $0x8] sm:$0xff]
        %v818 = vld [vmem:[%s3 + $0x10] sm:$0xff]
        %v819 = vld [vmem:[%s3 + $0x18] sm:$0xff]
        %v820 = vld [vmem:[%s4] sm:$0xff]
        %v821 = vld [vmem:[%s4 + $0x8] sm:$0xff]
        %v822 = vld [vmem:[%s4 + $0x10] sm:$0xff]
        %v823 = vld [vmem:[%s4 + $0x18] sm:$0xff]
        %v824 = vadd.f32 %v743, %v801
        %825 = vadd.xlane.f32.xlu0 %v824
        %v826 = vpop.xlane.xlu0 %825
        %v827 = vadd.f32 %v746, %v804
        %828 = vadd.xlane.f32.xlu0 %v827
        %v829 = vpop.xlane.xlu0 %828
        %v830 = vadd.f32 %v749, %v807
        %831 = vadd.xlane.f32.xlu0 %v830
        %v832 = vpop.xlane.xlu0 %831
        %v833 = vadd.f32 %v752, %v810
        %834 = vadd.xlane.f32.xlu0 %v833
        %v835 = vpop.xlane.xlu0 %834
        %vm836 = vcmask 261120
        %v838 = vsel %vm836, %v812, 0
        %v841 = vsel %vm836, %v813, 0
        %v844 = vsel %vm836, %v814, 0
        %v847 = vsel %vm836, %v815, 0
        %849 = vmatpush.msra.mxu0 0.0
        %850 = vmatpush.msra.mxu0 0.0
        %851 = vmatpush.msra.mxu0 0.0
        %852 = vmatpush.msra.mxu0 0.0
        %853 = vmatpush.msra.mxu0 0.0
        %854 = vmatpush.msra.mxu0 0.0
        %855 = vmatpush.msra.mxu0 0.0
        %856 = vmatpush.msra.mxu0 0.0
        %857 = vmatpush.msra.mxu0 0.0
        %858 = vmatpush.msra.mxu0 0.0
        %859 = vmatpush.msra.mxu0 0.0
        %860 = vmatpush.msra.mxu0 0.0
        %861 = vmatpush.msra.mxu0 %v835
        %862 = vmatpush.msra.mxu0 %v832
        %863 = vmatpush.msra.mxu0 %v829
        %864 = vmatpush.msra.mxu0 %v826
        %865 = vmatmul.f32.gmra.mxu0 %v838
        %v866 = vpop.f32.mrf.mxu0
        %v867 = vadd.f32 0.0, %v866
        %868 = vmatmul.f32.gmra.mxu0 %v841
        %v869 = vpop.f32.mrf.mxu0
        %v870 = vadd.f32 0.0, %v869
        %871 = vmatmul.f32.gmra.mxu0 %v844
        %v872 = vpop.f32.mrf.mxu0
        %v873 = vadd.f32 0.0, %v872
        %874 = vmatmul.f32.gmra.mxu0 %v847
        %v875 = vpop.f32.mrf.mxu0
        %v876 = vadd.f32 0.0, %v875
        %877 = vdwg.mxu0
        %v878 = vmul.f32 %v867, 0.00024414063
        %v879 = vmul.f32 %v870, 0.00024414063
        %v880 = vmul.f32 %v873, 0.00024414063
        %v881 = vmul.f32 %v876, 0.00024414063
        %883 = vset.pattern.permute.xlu0 0
        %884 = vperm.xlu0 %883, %v878
        %v885 = vpop.permute.xlu0 %884
        %888 = vset.pattern.permute.xlu0 0
        %889 = vperm.xlu0 %888, %v879
        %v890 = vpop.permute.xlu0 %889
        %893 = vset.pattern.permute.xlu0 0
        %894 = vperm.xlu0 %893, %v880
        %v895 = vpop.permute.xlu0 %894
        %898 = vset.pattern.permute.xlu0 0
        %899 = vperm.xlu0 %898, %v881
        %v900 = vpop.permute.xlu0 %899
        %v902 = vsub.f32 %v743, %v885
        %v903 = vsub.f32 %v801, %v885
        %v904 = vsub.f32 %v746, %v890
        %v905 = vsub.f32 %v804, %v890
        %v906 = vsub.f32 %v749, %v895
        %v907 = vsub.f32 %v807, %v895
        %v908 = vsub.f32 %v752, %v900
        %v909 = vsub.f32 %v810, %v900
        %v910 = vmul.f32 %v902, %v902
        %v911 = vmul.f32 %v903, %v903
        %v912 = vmul.f32 %v904, %v904
        %v913 = vmul.f32 %v905, %v905
        %v914 = vmul.f32 %v906, %v906
        %v915 = vmul.f32 %v907, %v907
        %v916 = vmul.f32 %v908, %v908
        %v917 = vmul.f32 %v909, %v909
        %v918 = vadd.f32 %v910, %v911
        %919 = vadd.xlane.f32.xlu0 %v918
        %v920 = vpop.xlane.xlu0 %919
        %v921 = vadd.f32 %v912, %v913
        %922 = vadd.xlane.f32.xlu0 %v921
        %v923 = vpop.xlane.xlu0 %922
        %v924 = vadd.f32 %v914, %v915
        %925 = vadd.xlane.f32.xlu0 %v924
        %v926 = vpop.xlane.xlu0 %925
        %v927 = vadd.f32 %v916, %v917
        %928 = vadd.xlane.f32.xlu0 %v927
        %v929 = vpop.xlane.xlu0 %928
        %930 = vmatpush.msra.mxu0 0.0
        %931 = vmatpush.msra.mxu0 0.0
        %932 = vmatpush.msra.mxu0 0.0
        %933 = vmatpush.msra.mxu0 0.0
        %934 = vmatpush.msra.mxu0 0.0
        %935 = vmatpush.msra.mxu0 0.0
        %936 = vmatpush.msra.mxu0 0.0
        %937 = vmatpush.msra.mxu0 0.0
        %938 = vmatpush.msra.mxu0 0.0
        %939 = vmatpush.msra.mxu0 0.0
        %940 = vmatpush.msra.mxu0 0.0
        %941 = vmatpush.msra.mxu0 0.0
        %942 = vmatpush.msra.mxu0 %v929
        %943 = vmatpush.msra.mxu0 %v926
        %944 = vmatpush.msra.mxu0 %v923
        %945 = vmatpush.msra.mxu0 %v920
        %946 = vmatmul.f32.gmra.mxu0 %v838
        %v947 = vpop.f32.mrf.mxu0
        %v948 = vadd.f32 0.0, %v947
        %949 = vmatmul.f32.gmra.mxu0 %v841
        %v950 = vpop.f32.mrf.mxu0
        %v951 = vadd.f32 0.0, %v950
        %952 = vmatmul.f32.gmra.mxu0 %v844
        %v953 = vpop.f32.mrf.mxu0
        %v954 = vadd.f32 0.0, %v953
        %955 = vmatmul.f32.gmra.mxu0 %v847
        %v956 = vpop.f32.mrf.mxu0
        %v957 = vadd.f32 0.0, %v956
        %958 = vdwg.mxu0
        %v959 = vmul.f32 %v948, 0.00024414063
        %v960 = vmul.f32 %v951, 0.00024414063
        %v961 = vmul.f32 %v954, 0.00024414063
        %v962 = vmul.f32 %v957, 0.00024414063
        %v963 = vadd.f32 %v959, 1e-05
        %v964 = vadd.f32 %v960, 1e-05
        %v965 = vadd.f32 %v961, 1e-05
        %v966 = vadd.f32 %v962, 1e-05
        %v967 = vrsqrt.pop %v963
        %v968 = vmul.f32 %v967, %v963
        %v969 = vmul.f32 %v968, %v967
        %v970 = vmul.f32 0.5, %v969
        %v971 = vsub.f32 1.5, %v970
        %v972 = vmul.f32 %v967, %v971
        %vm973 = vweird.f32 %v963
        %vm974 = vweird.f32 %v967
        %vm975 = vmor %vm973, %vm974
        %v976 = vsel %vm975, %v967, %v972
        %v977 = vrsqrt.pop %v964
        %v978 = vmul.f32 %v977, %v964
        %v979 = vmul.f32 %v978, %v977
        %v980 = vmul.f32 0.5, %v979
        %v981 = vsub.f32 1.5, %v980
        %v982 = vmul.f32 %v977, %v981
        %vm983 = vweird.f32 %v964
        %vm984 = vweird.f32 %v977
        %vm985 = vmor %vm983, %vm984
        %v986 = vsel %vm985, %v977, %v982
        %v987 = vrsqrt.pop %v965
        %v988 = vmul.f32 %v987, %v965
        %v989 = vmul.f32 %v988, %v987
        %v990 = vmul.f32 0.5, %v989
        %v991 = vsub.f32 1.5, %v990
        %v992 = vmul.f32 %v987, %v991
        %vm993 = vweird.f32 %v965
        %vm994 = vweird.f32 %v987
        %vm995 = vmor %vm993, %vm994
        %v996 = vsel %vm995, %v987, %v992
        %v997 = vrsqrt.pop %v966
        %v998 = vmul.f32 %v997, %v966
        %v999 = vmul.f32 %v998, %v997
        %v1000 = vmul.f32 0.5, %v999
        %v1001 = vsub.f32 1.5, %v1000
        %v1002 = vmul.f32 %v997, %v1001
        %vm1003 = vweird.f32 %v966
        %vm1004 = vweird.f32 %v997
        %vm1005 = vmor %vm1003, %vm1004
        %v1006 = vsel %vm1005, %v997, %v1002
        %v1007 = vmul.f32 %v816, %v976
        %v1008 = vmul.f32 %v817, %v986
        %v1009 = vmul.f32 %v818, %v996
        %v1010 = vmul.f32 %v819, %v1006
        %1012 = vset.pattern.permute.xlu0 0
        %1013 = vperm.xlu0 %1012, %v1007
        %v1014 = vpop.permute.xlu0 %1013
        %1017 = vset.pattern.permute.xlu0 0
        %1018 = vperm.xlu0 %1017, %v1008
        %v1019 = vpop.permute.xlu0 %1018
        %1022 = vset.pattern.permute.xlu0 0
        %1023 = vperm.xlu0 %1022, %v1009
        %v1024 = vpop.permute.xlu0 %1023
        %1027 = vset.pattern.permute.xlu0 0
        %1028 = vperm.xlu0 %1027, %v1010
        %v1029 = vpop.permute.xlu0 %1028
        %v1031 = vmul.f32 %v902, %v1014
        %v1032 = vmul.f32 %v903, %v1014
        %v1033 = vmul.f32 %v904, %v1019
        %v1034 = vmul.f32 %v905, %v1019
        %v1035 = vmul.f32 %v906, %v1024
        %v1036 = vmul.f32 %v907, %v1024
        %v1037 = vmul.f32 %v908, %v1029
        %v1038 = vmul.f32 %v909, %v1029
        %1040 = vset.pattern.permute.xlu0 0
        %1041 = vperm.xlu0 %1040, %v820
        %v1042 = vpop.permute.xlu0 %1041
        %1045 = vset.pattern.permute.xlu0 0
        %1046 = vperm.xlu0 %1045, %v821
        %v1047 = vpop.permute.xlu0 %1046
        %1050 = vset.pattern.permute.xlu0 0
        %1051 = vperm.xlu0 %1050, %v822
        %v1052 = vpop.permute.xlu0 %1051
        %1055 = vset.pattern.permute.xlu0 0
        %1056 = vperm.xlu0 %1055, %v823
        %v1057 = vpop.permute.xlu0 %1056
        %v1059 = vadd.f32 %v1031, %v1042
        %v1060 = vadd.f32 %v1032, %v1042
        %v1061 = vadd.f32 %v1033, %v1047
        %v1062 = vadd.f32 %v1034, %v1047
        %v1063 = vadd.f32 %v1035, %v1052
        %v1064 = vadd.f32 %v1036, %v1052
        %v1065 = vadd.f32 %v1037, %v1057
        %v1066 = vadd.f32 %v1038, %v1057
        %v1067 = vmax.f32 %v1059, 0.0
        %v1068 = vmax.f32 %v1060, 0.0
        %v1069 = vmax.f32 %v1061, 0.0
        %v1070 = vmax.f32 %v1062, 0.0
        %v1071 = vmax.f32 %v1063, 0.0
        %v1072 = vmax.f32 %v1064, 0.0
        %v1073 = vmax.f32 %v1065, 0.0
        %v1074 = vmax.f32 %v1066, 0.0
        %1075 = vst [vmem:[%s251] sm:$0xff] %v1067
        %1076 = vst [vmem:[%s251 + $0x8] sm:$0xff] %v1068
        %1077 = vst [vmem:[%s251 + $0x10] sm:$0xff] %v1069
        %1078 = vst [vmem:[%s251 + $0x18] sm:$0xff] %v1070
        %1079 = vst [vmem:[%s251 + $0x20] sm:$0xff] %v1071
        %1080 = vst [vmem:[%s251 + $0x28] sm:$0xff] %v1072
        %1081 = vst [vmem:[%s251 + $0x30] sm:$0xff] %v1073
        %1082 = vst [vmem:[%s251 + $0x38] sm:$0xff] %v1074
        %s1083 = sand.u32 %s139, 1
        %s1084 = scalar_lea.sflag [#allocation6], %s1083
        %s1085 = sand.u32 %s139, 1
        %s1086 = smul.addr %s1085, 64
        %s1087 = scalar_lea.vmem [#allocation9], %s1086
        // Predicated region
        $region49: #{tpu_custom_call.1} parent=39 // pred_check
          %p1088 = pneg %p149
        $region50: #{tpu_custom_call.1} parent=39 // pred_check_branch
          %1090 = sbr.rel (%p1088) target = $region52
        $region51: #{tpu_custom_call.1} parent=39 // pred_region
          %1092 = vsyncadd %s1084, 0
          %s1093 = smul.addr %s21, 8
          %s1094 = smul.addr %s1093, 8
          %s1095 = scalar_lea.hbm %s5, %s1094
          %s1096 = sshll.u32 %s1087, 4
          %s1097 = int_to_ptr.vmem [resolvable:$true] %s1096
          %s1098 = sshll.u32 %s1095, 4
          %s1099 = int_to_ptr.hbm [resolvable:$true] %s1098
          %1104 = dma.vmem_to_hbm [thread:$0]  %s1097, 1024, %s1099, %s1084, 256, 256, 16
        $region52: #{tpu_custom_call.1} parent=39 // pred_fallthru
          _
      $region40: #{tpu_custom_call.1} parent=5 // pred_fallthru
        _
      %p1105 = scmp.le.s32.totalorder 2, %s16
      // Predicated region
      $region53: #{tpu_custom_call.1} parent=5 // pred_check
        %p1106 = pneg %p1105
      $region54: #{tpu_custom_call.1} parent=5 // pred_check_branch
        %1108 = sbr.rel (%p1106) target = $region56
      $region55: #{tpu_custom_call.1} parent=5 // pred_region
        %s1109 = ssub.s32 %s16, 2
        // Predicated region
        $region57: #{tpu_custom_call.1} parent=55 // pred_check
          %p1110 = pneg %p155
        $region58: #{tpu_custom_call.1} parent=55 // pred_check_branch
          %1112 = sbr.rel (%p1110) target = $region60
        $region59: #{tpu_custom_call.1} parent=55 // pred_region
          %s1113 = sand.u32 %s140, 1
          %s1114 = scalar_lea.sflag [#allocation6], %s1113
          %s1115 = sand.u32 %s140, 1
          %s1116 = smul.addr %s1115, 64
          %s1117 = scalar_lea.vmem [#allocation9], %s1116
          %1119 = dma.done %s1114, 1024
        $region60: #{tpu_custom_call.1} parent=55 // pred_fallthru
          _
      $region56: #{tpu_custom_call.1} parent=5 // pred_fallthru
        _
    $region6: #{tpu_custom_call.1} parent=1 // loop_footer
      %s20 = sadd.s32 1, %s16
    $region7: #{tpu_custom_call.1} parent=1 // loop_footer_branch
      %15 = sbr.rel target = $region3
    $region8: #{tpu_custom_call.1} parent=1 // loop_exit
      _
    %1120 = vsyncpa [#allocation5], 1
    %s1121 = scalar_lea.sflag [#allocation5], 1
    %1122 = vsyncpa %s1121, 1
    %1123 = vsyncpa [#allocation8], 1
    %1124 = vsyncpa [#allocation6], 1
    %s1125 = scalar_lea.sflag [#allocation6], 1
    %1126 = vsyncpa %s1125, 1

</llo_original>
